<compile_context>
chip_gen: v6e
topology: v6e:2x2x1
jax: 0.10.0
libtpu: 0.0.40
codegen_flags: <defaults>
</compile_context>

<pallas_src>
import jax
import jax.numpy as jnp
import numpy as np
from jax import lax
from jax.experimental import pallas as pl
from jax.experimental.pallas import tpu as pltpu

_SQRT_HALF = 0.7071067811865476


def _mlp_kernel(x_ref, w1_ref, b1_ref, w2_ref, b2_ref, o_ref):
    """Fused Linear -> exact GELU -> Linear on a (row_tile, in_dim) tile.

    Matmul operands are bf16 (MXU native); accumulation is f32.
    """
    x = x_ref[...].astype(jnp.bfloat16)
    h = jnp.dot(x, w1_ref[...], preferred_element_type=jnp.float32) + b1_ref[...]
    # exact GELU (torch nn.GELU default, erf-based) — erf runs on the EUP slot
    h = 0.5 * h * (1.0 + lax.erf(h * jnp.float32(_SQRT_HALF)))
    y = jnp.dot(h.astype(jnp.bfloat16), w2_ref[...],
                preferred_element_type=jnp.float32) + b2_ref[...]
    o_ref[...] = y.astype(o_ref.dtype)


def _choose_row_tile(rows, in_dim, hid_dim):
    """Pick a big, MXU-friendly row tile while keeping the f32 hidden
    intermediate + double-buffered activation tiles within a modest VMEM slice."""
    r8 = ((rows + 7) // 8) * 8
    if r8 <= 256:
        return r8  # whole problem in one grid step
    for t in (512, 256, 128, 64, 32, 16, 8):
        per_tile = 2 * 2 * t * in_dim * 4 + t * hid_dim * 4  # in/out dbl-buf + hidden
        if per_tile <= 8 * 1024 * 1024:
            return t
    return 8


def mlp_forward(x, w1, b1, w2, b2):
    """y = GELU(x @ w1 + b1) @ w2 + b2, fused in a single Pallas kernel.

    x: (..., in_dim); w1: (in_dim, hid_dim); w2: (hid_dim, in_dim).
    """
    in_dim = x.shape[-1]
    hid_dim = w1.shape[1]
    lead = x.shape[:-1]
    rows = int(np.prod(lead)) if lead else 1
    x2d = x.reshape(rows, in_dim)

    row_tile = _choose_row_tile(rows, in_dim, hid_dim)
    rows_pad = ((rows + row_tile - 1) // row_tile) * row_tile
    if rows_pad != rows:
        x2d = jnp.pad(x2d, ((0, rows_pad - rows), (0, 0)))

    # bf16 weights: MXU-native operands + half the resident-weight VMEM.
    w1b = w1.astype(jnp.bfloat16)
    w2b = w2.astype(jnp.bfloat16)
    b1r = b1.reshape(1, hid_dim).astype(jnp.float32)
    b2r = b2.reshape(1, in_dim).astype(jnp.float32)

    row_spec = pl.BlockSpec((row_tile, in_dim), lambda i: (i, 0))
    full = lambda a: pl.BlockSpec(a.shape, lambda i: (0, 0))  # constant-index operand

    out = pl.pallas_call(
        _mlp_kernel,
        out_shape=jax.ShapeDtypeStruct((rows_pad, in_dim), x.dtype),
        grid=(rows_pad // row_tile,),
        in_specs=[row_spec, full(w1b), full(b1r), full(w2b), full(b2r)],
        out_specs=row_spec,
        compiler_params=pltpu.CompilerParams(
            dimension_semantics=("parallel",),
            vmem_limit_bytes=48 * 1024 * 1024,
        ),
    )(x2d, w1b, b1r, w2b, b2r)

    if rows_pad != rows:
        out = out[:rows]
    return out.reshape(*lead, in_dim)


def mlp_ref(x, w1, b1, w2, b2):
    """Pure-JAX f32 reference mirroring the PyTorch forward."""
    h = x @ w1 + b1
    h = 0.5 * h * (1.0 + jax.scipy.special.erf(h * jnp.float32(_SQRT_HALF)))
    return h @ w2 + b2


if __name__ == "__main__":
    # MLP(in_dim=16, hid_dim=64) applied over a (batch=2, seq=8, in_dim=16) input.
    B, N, IN, HID = 2, 8, 16, 64

    key = jax.random.PRNGKey(0)
    k = jax.random.split(key, 5)
    x = jax.random.normal(k[0], (B, N, IN), jnp.float32)
    w1 = 0.1 * jax.random.normal(k[1], (IN, HID), jnp.float32)   # (in, out) layout
    b1 = 0.1 * jax.random.normal(k[2], (HID,), jnp.float32)
    w2 = 0.1 * jax.random.normal(k[3], (HID, IN), jnp.float32)
    b2 = 0.1 * jax.random.normal(k[4], (IN,), jnp.float32)

    out = jax.block_until_ready(mlp_forward(x, w1, b1, w2, b2))

    ref = mlp_ref(x, w1, b1, w2, b2)
    # bf16 matmul operands (f32 accumulation) -> looser tolerance than pure f32.
    np.testing.assert_allclose(np.asarray(out), np.asarray(ref), rtol=2e-2, atol=2e-2)
    print("KERNEL_OK")
</pallas_src>

<mosaic_0001>
module attributes {stable_mosaic.version = 11 : i64} {
  func.func @_mlp_kernel(%arg0: i32, %arg1: memref<16x16xf32, #tpu.memory_space<vmem>>, %arg2: memref<16x64xbf16, #tpu.memory_space<vmem>>, %arg3: memref<1x64xf32, #tpu.memory_space<vmem>>, %arg4: memref<64x16xbf16, #tpu.memory_space<vmem>>, %arg5: memref<1x16xf32, #tpu.memory_space<vmem>>, %arg6: memref<16x16xf32, #tpu.memory_space<vmem>>) attributes {dimension_semantics = [#tpu.dimension_semantics<parallel>], iteration_bounds = array<i64: 1>, scalar_prefetch = 0 : i64, scratch_operands = 0 : i64, tpu.core_type = #tpu.core_type<tc>, window_params = [{transform_indices = @transform_0, window_bounds = array<i64: 16, 16>}, {pipeline_mode = #tpu.pipeline_mode<synchronous>, transform_indices = @transform_1, window_bounds = array<i64: 16, 64>}, {pipeline_mode = #tpu.pipeline_mode<synchronous>, transform_indices = @transform_2, window_bounds = array<i64: 1, 64>}, {pipeline_mode = #tpu.pipeline_mode<synchronous>, transform_indices = @transform_3, window_bounds = array<i64: 64, 16>}, {pipeline_mode = #tpu.pipeline_mode<synchronous>, transform_indices = @transform_4, window_bounds = array<i64: 1, 16>}, {transform_indices = @transform_5, window_bounds = array<i64: 16, 16>}]} {
    %c0 = arith.constant 0 : index
    %c0_0 = arith.constant 0 : index
    %0 = vector.load %arg1[%c0, %c0_0] : memref<16x16xf32, #tpu.memory_space<vmem>>, vector<16x16xf32>
    %1 = arith.truncf %0 : vector<16x16xf32> to vector<16x16xbf16>
    %c0_1 = arith.constant 0 : index
    %c0_2 = arith.constant 0 : index
    %2 = vector.load %arg2[%c0_1, %c0_2] : memref<16x64xbf16, #tpu.memory_space<vmem>>, vector<16x64xbf16>
    %cst = arith.constant dense<0.000000e+00> : vector<16x64xf32>
    %3 = tpu.matmul %1, %2, %cst {dimension_numbers = #tpu.dot_dimension_numbers<[1], [0], [0], [1], [0, 0, 1, 1], [], []>} : vector<16x16xbf16>, vector<16x64xbf16>, vector<16x64xf32> -> vector<16x64xf32>
    %c0_3 = arith.constant 0 : index
    %c0_4 = arith.constant 0 : index
    %4 = vector.load %arg3[%c0_3, %c0_4] : memref<1x64xf32, #tpu.memory_space<vmem>>, vector<1x64xf32>
    %5 = vector.broadcast %4 : vector<1x64xf32> to vector<16x64xf32>
    %6 = arith.addf %3, %5 : vector<16x64xf32>
    %cst_5 = arith.constant 5.000000e-01 : f32
    %7 = vector.broadcast %cst_5 : f32 to vector<16x64xf32>
    %8 = arith.mulf %7, %6 : vector<16x64xf32>
    %cst_6 = arith.constant 0.707106769 : f32
    %9 = vector.broadcast %cst_6 : f32 to vector<16x64xf32>
    %10 = arith.mulf %6, %9 : vector<16x64xf32>
    %11 = math.erf %10 : vector<16x64xf32>
    %cst_7 = arith.constant 1.000000e+00 : f32
    %12 = vector.broadcast %cst_7 : f32 to vector<16x64xf32>
    %13 = arith.addf %12, %11 : vector<16x64xf32>
    %14 = arith.mulf %8, %13 : vector<16x64xf32>
    %15 = arith.truncf %14 : vector<16x64xf32> to vector<16x64xbf16>
    %c0_8 = arith.constant 0 : index
    %c0_9 = arith.constant 0 : index
    %16 = vector.load %arg4[%c0_8, %c0_9] : memref<64x16xbf16, #tpu.memory_space<vmem>>, vector<64x16xbf16>
    %cst_10 = arith.constant dense<0.000000e+00> : vector<16x16xf32>
    %17 = tpu.matmul %15, %16, %cst_10 {dimension_numbers = #tpu.dot_dimension_numbers<[1], [0], [0], [1], [0, 0, 1, 1], [], []>} : vector<16x64xbf16>, vector<64x16xbf16>, vector<16x16xf32> -> vector<16x16xf32>
    %c0_11 = arith.constant 0 : index
    %c0_12 = arith.constant 0 : index
    %18 = vector.load %arg5[%c0_11, %c0_12] : memref<1x16xf32, #tpu.memory_space<vmem>>, vector<1x16xf32>
    %19 = vector.broadcast %18 : vector<1x16xf32> to vector<16x16xf32>
    %20 = arith.addf %17, %19 : vector<16x16xf32>
    %c0_13 = arith.constant 0 : index
    %c0_14 = arith.constant 0 : index
    %21 = vector.load %arg6[%c0_13, %c0_14] : memref<16x16xf32, #tpu.memory_space<vmem>>, vector<16x16xf32>
    tpu.vector_store %arg6[%c0_13, %c0_14], %20 {strides = array<i32>} : memref<16x16xf32, #tpu.memory_space<vmem>>, vector<16x16xf32>,
    return
  }
  func.func @transform_0(%arg0: i32) -> (i32, i32) {
    %c0_i32 = arith.constant 0 : i32
    %c0_i32_0 = arith.constant 0 : i32
    return %arg0, %c0_i32 : i32, i32
  }
  func.func @transform_1(%arg0: i32) -> (i32, i32) {
    %c0_i32 = arith.constant 0 : i32
    %c0_i32_0 = arith.constant 0 : i32
    %c0_i32_1 = arith.constant 0 : i32
    return %c0_i32, %c0_i32_0 : i32, i32
  }
  func.func @transform_2(%arg0: i32) -> (i32, i32) {
    %c0_i32 = arith.constant 0 : i32
    %c0_i32_0 = arith.constant 0 : i32
    %c0_i32_1 = arith.constant 0 : i32
    return %c0_i32, %c0_i32_0 : i32, i32
  }
  func.func @transform_3(%arg0: i32) -> (i32, i32) {
    %c0_i32 = arith.constant 0 : i32
    %c0_i32_0 = arith.constant 0 : i32
    %c0_i32_1 = arith.constant 0 : i32
    return %c0_i32, %c0_i32_0 : i32, i32
  }
  func.func @transform_4(%arg0: i32) -> (i32, i32) {
    %c0_i32 = arith.constant 0 : i32
    %c0_i32_0 = arith.constant 0 : i32
    %c0_i32_1 = arith.constant 0 : i32
    return %c0_i32, %c0_i32_0 : i32, i32
  }
  func.func @transform_5(%arg0: i32) -> (i32, i32) {
    %c0_i32 = arith.constant 0 : i32
    %c0_i32_0 = arith.constant 0 : i32
    return %arg0, %c0_i32 : i32, i32
  }
}

</mosaic_0001>

<llo_original>
// kernel: tpu_custom_call.1
$region0: #{tpu_custom_call.1}
  #allocation0 [shape = 'u32[]', space=smem, size = 0x4, offset = 0x4, fixed_abs, tag = 'smem constant byte address 0x4 - core index']
  #allocation1 [shape = 'u32[144,128]{1,0:T(1,128)}', space=vmem, size = 0x12000, scoped, tag = 'internal scratch']
  %s0 = inlined_call_operand.vmem [shape: f32[16,16], index: 0, kind: input, shape index: {}]
  %s1 = inlined_call_operand.vmem [shape: bf16[16,64], index: 1, kind: input, shape index: {}]
  %s2 = inlined_call_operand.vmem [shape: f32[1,64], index: 2, kind: input, shape index: {}]
  %s3 = inlined_call_operand.vmem [shape: bf16[64,16], index: 3, kind: input, shape index: {}]
  %s4 = inlined_call_operand.vmem [shape: f32[1,16], index: 4, kind: input, shape index: {}]
  %s5 = inlined_call_operand.hbm [shape: f32[16,16], index: 5, kind: output, shape index: {}]
  %s6 = sld [smem:[#allocation0]]
  $region30: #{tpu_custom_call.1} parent=0
    _
  %s8 = ssub.s32 1, %s6
  %s9 = scalar_select 0, %s8, %s6
  $region1: #{tpu_custom_call.1} parent=0
    #allocation2 [shape = 'u8[8192]{0}', space=vmem, size = 0x2000, scoped, tag = 'output window, operand 0, single buffered']
    #allocation3 [shape = 's32[1]{0}', space=sflag, size = 0x4, scoped, tag = 'scoped memory for tpu_custom_call.1']
    %10 = vsyncpa [#allocation3], 0
    // Predicated region
    $region2: #{tpu_custom_call.1} parent=1 // pred_check
      _
    $region3: #{tpu_custom_call.1} parent=1 // pred_check_branch
      %12 = sbr.rel (0) target = $region5
    $region4: #{tpu_custom_call.1} parent=1 // pred_region
      _
    $region5: #{tpu_custom_call.1} parent=1 // pred_fallthru
      _
    // Predicated region
    $region6: #{tpu_custom_call.1} parent=1 // pred_check
      _
    $region7: #{tpu_custom_call.1} parent=1 // pred_check_branch
      %14 = sbr.rel (0) target = $region9
    $region8: #{tpu_custom_call.1} parent=1 // pred_region
      _
    $region9: #{tpu_custom_call.1} parent=1 // pred_fallthru
      _
    // Predicated region
    $region10: #{tpu_custom_call.1} parent=1 // pred_check
      _
    $region11: #{tpu_custom_call.1} parent=1 // pred_check_branch
      %16 = sbr.rel (0) target = $region13
    $region12: #{tpu_custom_call.1} parent=1 // pred_region
      _
    $region13: #{tpu_custom_call.1} parent=1 // pred_fallthru
      _
    // Predicated region
    $region14: #{tpu_custom_call.1} parent=1 // pred_check
      _
    $region15: #{tpu_custom_call.1} parent=1 // pred_check_branch
      %18 = sbr.rel (0) target = $region17
    $region16: #{tpu_custom_call.1} parent=1 // pred_region
      _
    $region17: #{tpu_custom_call.1} parent=1 // pred_fallthru
      _
    // Predicated region
    $region18: #{tpu_custom_call.1} parent=1 // pred_check
      _
    $region19: #{tpu_custom_call.1} parent=1 // pred_check_branch
      %20 = sbr.rel (0) target = $region21
    $region20: #{tpu_custom_call.1} parent=1 // pred_region
      _
    $region21: #{tpu_custom_call.1} parent=1 // pred_fallthru
      _
    %v22 = vld [vmem:[%s0] sm:$0xff]
    %v23 = vld [vmem:[%s0 + $0x8] sm:$0xff]
    %v24 = vpack.c.bf16 %v23, %v22
    %v25 = vld [vmem:[%s1] sm:$0xf]
    %v26 = vld [vmem:[%s1 + $0x4] sm:$0xf]
    %v27 = vld [vmem:[%s2] sm:$0x1]
    %v29 = vlaneseq
    %v30 = vshrl.u32 %v29, 7
    %v31 = vsub.s32 0, %v30
    %v32 = vrot.slane %v27, %v31
    %v36 = vunpack.c.l.b16 %v25
    %v37 = vunpack.c.l.b16 %v26
    %v38 = vpack.c.b16 %v37, %v36
    %vm40 = vcmask 130048
    %v42 = vsel %vm40, %v24, 0
    %44 = vmatprep.subr.bf16.mxu0 0
    %45 = vmatpush1.bf16.msra.mxu0 0
    %46 = vmatprep.subr.bf16.mxu0 0
    %47 = vmatpush1.bf16.msra.mxu0 0
    %48 = vmatprep.subr.bf16.mxu0 0
    %49 = vmatpush1.bf16.msra.mxu0 0
    %50 = vmatprep.subr.bf16.mxu0 0
    %51 = vmatpush1.bf16.msra.mxu0 0
    %52 = vmatprep.subr.bf16.mxu0 0
    %53 = vmatpush1.bf16.msra.mxu0 0
    %54 = vmatprep.subr.bf16.mxu0 0
    %55 = vmatpush1.bf16.msra.mxu0 0
    %56 = vmatprep.subr.bf16.mxu0 0
    %57 = vmatpush1.bf16.msra.mxu0 0
    %58 = vmatprep.subr.bf16.mxu0 0
    %59 = vmatpush1.bf16.msra.mxu0 %v38
    %60 = vmatprep.subr.bf16.mxu0 0
    %61 = vmatpush2.bf16.msra.mxu0 0
    %62 = vmatprep.subr.bf16.mxu0 0
    %63 = vmatpush2.bf16.msra.mxu0 0
    %64 = vmatprep.subr.bf16.mxu0 0
    %65 = vmatpush2.bf16.msra.mxu0 0
    %66 = vmatprep.subr.bf16.mxu0 0
    %67 = vmatpush2.bf16.msra.mxu0 0
    %68 = vmatprep.subr.bf16.mxu0 0
    %69 = vmatpush2.bf16.msra.mxu0 0
    %70 = vmatprep.subr.bf16.mxu0 0
    %71 = vmatpush2.bf16.msra.mxu0 0
    %72 = vmatprep.subr.bf16.mxu0 0
    %73 = vmatpush2.bf16.msra.mxu0 0
    %74 = vmatprep.subr.bf16.mxu0 0
    %75 = vmatpush2.bf16.msra.mxu0 0
    %76 = vmatprep.mubr.bf16.mxu0 0
    %77 = vmatmul.mubr.bf16.gmra.mxu0 %v42
    %v78 = vpop.f32.mrf.mxu0
    %v79 = vadd.f32 %v32, %v78
    %v80 = vpop.f32.mrf.mxu0
    %v81 = vpop.f32.mrf.mxu0
    %v82 = vadd.f32 %v32, %v81
    %v83 = vpop.f32.mrf.mxu0
    %84 = vdwg.mxu0
    %v85 = vmul.f32 %v79, 0.5
    %v86 = vmul.f32 %v82, 0.5
    %v87 = vmul.f32 %v79, 0.70710677
    %v88 = vmul.f32 %v82, 0.70710677
    %v89 = verf.f32.pop %v87
    %v90 = verf.f32.pop %v88
    %v91 = vadd.f32 %v89, 1.0
    %v92 = vadd.f32 %v90, 1.0
    %v93 = vmul.f32 %v85, %v91
    %v94 = vmul.f32 %v86, %v92
    %v95 = vpack.c.bf16 %v94, %v93
    %v96 = vld [vmem:[%s3] sm:$0xf]
    %v97 = vld [vmem:[%s3 + $0x4] sm:$0xf]
    %v98 = vld [vmem:[%s3 + $0x8] sm:$0xf]
    %v99 = vld [vmem:[%s3 + $0xc] sm:$0xf]
    %v100 = vld [vmem:[%s3 + $0x10] sm:$0xf]
    %v101 = vld [vmem:[%s3 + $0x14] sm:$0xf]
    %v102 = vld [vmem:[%s3 + $0x18] sm:$0xf]
    %v103 = vld [vmem:[%s3 + $0x1c] sm:$0xf]
    %v104 = vld [vmem:[%s4] sm:$0x1]
    %v106 = vlaneseq
    %v107 = vshrl.u32 %v106, 7
    %v108 = vsub.s32 0, %v107
    %v109 = vrot.slane %v104, %v108
    %v119 = vunpack.c.l.b16 %v96
    %v120 = vunpack.c.l.b16 %v97
    %v121 = vunpack.c.l.b16 %v98
    %v122 = vunpack.c.l.b16 %v99
    %v123 = vunpack.c.l.b16 %v100
    %v124 = vunpack.c.l.b16 %v101
    %v125 = vunpack.c.l.b16 %v102
    %v126 = vunpack.c.l.b16 %v103
    %v127 = vpack.c.b16 %v120, %v119
    %v128 = vpack.c.b16 %v122, %v121
    %v129 = vpack.c.b16 %v124, %v123
    %v130 = vpack.c.b16 %v126, %v125
    %vm135 = vcmask 523264
    %v137 = vsel %vm135, %v95, 0
    %139 = vmatprep.subr.bf16.mxu0 0
    %140 = vmatpush1.bf16.msra.mxu0 0
    %141 = vmatprep.subr.bf16.mxu0 0
    %142 = vmatpush1.bf16.msra.mxu0 0
    %143 = vmatprep.subr.bf16.mxu0 0
    %144 = vmatpush1.bf16.msra.mxu0 0
    %145 = vmatprep.subr.bf16.mxu0 0
    %146 = vmatpush1.bf16.msra.mxu0 0
    %147 = vmatprep.subr.bf16.mxu0 0
    %148 = vmatpush1.bf16.msra.mxu0 %v130
    %149 = vmatprep.subr.bf16.mxu0 0
    %150 = vmatpush1.bf16.msra.mxu0 %v129
    %151 = vmatprep.subr.bf16.mxu0 0
    %152 = vmatpush1.bf16.msra.mxu0 %v128
    %153 = vmatprep.subr.bf16.mxu0 0
    %154 = vmatpush1.bf16.msra.mxu0 %v127
    %155 = vmatprep.subr.bf16.mxu0 0
    %156 = vmatpush2.bf16.msra.mxu0 0
    %157 = vmatprep.subr.bf16.mxu0 0
    %158 = vmatpush2.bf16.msra.mxu0 0
    %159 = vmatprep.subr.bf16.mxu0 0
    %160 = vmatpush2.bf16.msra.mxu0 0
    %161 = vmatprep.subr.bf16.mxu0 0
    %162 = vmatpush2.bf16.msra.mxu0 0
    %163 = vmatprep.subr.bf16.mxu0 0
    %164 = vmatpush2.bf16.msra.mxu0 0
    %165 = vmatprep.subr.bf16.mxu0 0
    %166 = vmatpush2.bf16.msra.mxu0 0
    %167 = vmatprep.subr.bf16.mxu0 0
    %168 = vmatpush2.bf16.msra.mxu0 0
    %169 = vmatprep.subr.bf16.mxu0 0
    %170 = vmatpush2.bf16.msra.mxu0 0
    %171 = vmatprep.mubr.bf16.mxu0 0
    %172 = vmatmul.mubr.bf16.gmra.mxu0 %v137
    %v173 = vpop.f32.mrf.mxu0
    %v174 = vadd.f32 %v109, %v173
    %v175 = vpop.f32.mrf.mxu0
    %v176 = vpop.f32.mrf.mxu0
    %v177 = vadd.f32 %v109, %v176
    %v178 = vpop.f32.mrf.mxu0
    %179 = vdwg.mxu0
    %180 = vst.msk [vmem:[#allocation2] sm:$0xff] %vm40, %v174
    %181 = vst.msk [vmem:[#allocation2 + $0x8] sm:$0xff] %vm40, %v177
    // Predicated region
    $region22: #{tpu_custom_call.1} parent=1 // pred_check
      _
    $region23: #{tpu_custom_call.1} parent=1 // pred_check_branch
      %183 = sbr.rel (0) target = $region25
    $region24: #{tpu_custom_call.1} parent=1 // pred_region
      %s185 = ssub.s32 256, 256
      %186 = vsyncadd [#allocation3], %s185
      %s187 = sshll.u32 [#allocation2], 4
      %s188 = int_to_ptr.vmem [resolvable:$true] %s187
      %193 = dma.vmem_to_hbm [thread:$0]  %s188, 256, %s5, [#allocation3], 128, 128, 8
    $region25: #{tpu_custom_call.1} parent=1 // pred_fallthru
      _
    // Predicated region
    $region26: #{tpu_custom_call.1} parent=1 // pred_check
      _
    $region27: #{tpu_custom_call.1} parent=1 // pred_check_branch
      %195 = sbr.rel (0) target = $region29
    $region28: #{tpu_custom_call.1} parent=1 // pred_region
      %196 = dma.done [#allocation3], 256
    $region29: #{tpu_custom_call.1} parent=1 // pred_fallthru
      _
    %197 = vsyncpa [#allocation3], 1

</llo_original>
